<compile_context>
chip_gen: v6e
topology: v6e:2x2x1
jax: 0.10.0
libtpu: 0.0.40
codegen_flags: <defaults>
</compile_context>

<pallas_src>
import functools

import jax
import jax.numpy as jnp
from jax.experimental import pallas as pl
from jax.experimental.pallas import tpu as pltpu


def _round_up(x, m):
    return ((x + m - 1) // m) * m


def _softmax_nll_kernel(probs_ref, labels_ref, partial_ref, *, n_total):
    i = pl.program_id(0)
    probs = probs_ref[...]            # (TN, C) probabilities, native dtype
    labels = labels_ref[...]          # (TN, 1) int32 class indices
    tn, c = probs.shape

    # One-hot select the target-class probability per row:
    # compare (VPU) + masked lane-sum (XLU). Exact even in bf16 (single nonzero).
    class_ids = jax.lax.broadcasted_iota(jnp.int32, (tn, c), 1)
    onehot = class_ids == labels      # broadcast (TN,1) against (TN,C)
    picked = jnp.sum(jnp.where(onehot, probs, jnp.zeros_like(probs)),
                     axis=-1, keepdims=True)              # (TN, 1)
    picked = picked.astype(jnp.float32)

    # Mask padded rows of the last (remainder) tile: global row id >= N -> log(1)=0.
    row_ids = i * tn + jax.lax.broadcasted_iota(jnp.int32, (tn, 1), 0)
    valid = row_ids < n_total
    picked = jnp.where(valid, picked, jnp.ones_like(picked))

    # -log only on the (TN, 1) picked column; per-tile partial sum to SMEM.
    partial_ref[0, 0] = jnp.sum(-jnp.log(picked))


def softmax_nll(inputs, labels, *, target_tile_bytes=4 << 20):
    """inputs: (N, C) softmax probabilities; labels: (N,) int class indices.

    Returns mean over the batch of -log(inputs[i, labels[i]]) (torch NLLLoss
    with mean reduction applied to torch.log(inputs)).
    """
    n, c = inputs.shape
    itemsize = jnp.dtype(inputs.dtype).itemsize

    # Row-tile sized to ~target_tile_bytes per (double-buffered) input buffer,
    # multiple of 8 (sublane), clamped to the (padded) batch size.
    rows = max(8, ((target_tile_bytes // max(1, c * itemsize)) // 8) * 8)
    tn = min(rows, _round_up(n, 8))
    grid = pl.cdiv(n, tn)

    labels2d = labels.astype(jnp.int32).reshape(n, 1)

    partials = pl.pallas_call(
        functools.partial(_softmax_nll_kernel, n_total=n),
        grid=(grid,),
        out_shape=jax.ShapeDtypeStruct((grid, 1), jnp.float32),
        in_specs=[
            pl.BlockSpec((tn, c), lambda i: (i, 0)),
            pl.BlockSpec((tn, 1), lambda i: (i, 0)),
        ],
        out_specs=pl.BlockSpec((1, 1), lambda i: (i, 0),
                               memory_space=pltpu.MemorySpace.SMEM),
        compiler_params=pltpu.CompilerParams(
            dimension_semantics=("parallel",),
            vmem_limit_bytes=64 << 20,
        ),
    )(inputs, labels2d)

    # Tiny tail reduction in JAX; divide by the GLOBAL batch size once.
    return jnp.sum(partials) / jnp.float32(n)


if __name__ == "__main__":
    key = jax.random.PRNGKey(0)
    k_logits, k_labels = jax.random.split(key)

    N, C = 8, 32
    logits = jax.random.normal(k_logits, (N, C), dtype=jnp.float32)
    probs = jax.nn.softmax(logits, axis=-1)          # module expects softmax inputs
    labels = jax.random.randint(k_labels, (N,), 0, C, dtype=jnp.int32)

    loss = softmax_nll(probs, labels)
    loss = jax.block_until_ready(loss)

    # reference check (plain JAX): -mean(log(p)[i, labels[i]])
    ref = -jnp.mean(jnp.log(probs)[jnp.arange(N), labels])
    assert jnp.allclose(loss, ref, rtol=1e-5, atol=1e-6), (loss, ref)

    print("KERNEL_OK")
</pallas_src>

<mosaic_0001>
module attributes {stable_mosaic.version = 11 : i64} {
  func.func @_softmax_nll_kernel(%arg0: i32, %arg1: memref<8x32xf32, #tpu.memory_space<vmem>>, %arg2: memref<8x1xi32, #tpu.memory_space<vmem>>, %arg3: memref<1x1xf32, #tpu.memory_space<smem>>) attributes {dimension_semantics = [#tpu.dimension_semantics<parallel>], iteration_bounds = array<i64: 1>, scalar_prefetch = 0 : i64, scratch_operands = 0 : i64, tpu.core_type = #tpu.core_type<tc>, window_params = [{transform_indices = @transform_0, window_bounds = array<i64: 8, 32>}, {transform_indices = @transform_1, window_bounds = array<i64: 8, 1>}, {transform_indices = @transform_2, window_bounds = array<i64: 1, 1>}]} {
    %c0 = arith.constant 0 : index
    %c0_0 = arith.constant 0 : index
    %0 = vector.load %arg1[%c0, %c0_0] : memref<8x32xf32, #tpu.memory_space<vmem>>, vector<8x32xf32>
    %c0_1 = arith.constant 0 : index
    %c0_2 = arith.constant 0 : index
    %1 = vector.load %arg2[%c0_1, %c0_2] : memref<8x1xi32, #tpu.memory_space<vmem>>, vector<8x1xi32>
    %2 = tpu.iota {dimensions = array<i32: 1>} : vector<8x32xi32>
    %3 = vector.broadcast %1 : vector<8x1xi32> to vector<8x32xi32>
    %4 = arith.cmpi eq, %2, %3 : vector<8x32xi32>
    %cst = arith.constant 0.000000e+00 : f32
    %5 = vector.broadcast %cst : f32 to vector<8x32xf32>
    %6 = arith.select %4, %0, %5 : vector<8x32xi1>, vector<8x32xf32>
    %cst_3 = arith.constant dense<0.000000e+00> : vector<8xf32>
    %7 = vector.multi_reduction <add>, %6, %cst_3 [1] : vector<8x32xf32> to vector<8xf32>
    %8 = vector.shape_cast %7 : vector<8xf32> to vector<8x1xf32>
    %c8_i32 = arith.constant 8 : i32
    %9 = arith.muli %arg0, %c8_i32 : i32
    %10 = tpu.iota {dimensions = array<i32: 0>} : vector<8x1xi32>
    %11 = vector.broadcast %9 : i32 to vector<8x1xi32>
    %12 = arith.addi %11, %10 : vector<8x1xi32>
    %c8_i32_4 = arith.constant 8 : i32
    %13 = vector.broadcast %c8_i32_4 : i32 to vector<8x1xi32>
    %14 = arith.cmpi slt, %12, %13 : vector<8x1xi32>
    %cst_5 = arith.constant 1.000000e+00 : f32
    %15 = vector.broadcast %cst_5 : f32 to vector<8x1xf32>
    %16 = arith.select %14, %8, %15 : vector<8x1xi1>, vector<8x1xf32>
    %17 = math.log %16 : vector<8x1xf32>
    %cst_6 = arith.constant 0.000000e+00 : f32
    %18 = vector.broadcast %cst_6 : f32 to vector<8x1xf32>
    %19 = arith.subf %18, %17 : vector<8x1xf32>
    %20 = vector.shape_cast %19 : vector<8x1xf32> to vector<1x8x1xf32>
    %cst_7 = arith.constant dense<0.000000e+00> : vector<1xf32>
    %21 = vector.multi_reduction <add>, %20, %cst_7 [1, 2] : vector<1x8x1xf32> to vector<1xf32>
    %22 = vector.shape_cast %21 : vector<1xf32> to vector<1x1x1xf32>
    %23 = vector.extract %22[0, 0, 0] : f32 from vector<1x1x1xf32>
    %c0_8 = arith.constant 0 : index
    %c0_9 = arith.constant 0 : index
    %24 = memref.load %arg3[%c0_8, %c0_9] : memref<1x1xf32, #tpu.memory_space<smem>>
    memref.store %23, %arg3[%c0_8, %c0_9] : memref<1x1xf32, #tpu.memory_space<smem>>
    return
  }
  func.func @transform_0(%arg0: i32) -> (i32, i32) {
    %c0_i32 = arith.constant 0 : i32
    %c0_i32_0 = arith.constant 0 : i32
    return %arg0, %c0_i32 : i32, i32
  }
  func.func @transform_1(%arg0: i32) -> (i32, i32) {
    %c0_i32 = arith.constant 0 : i32
    %c0_i32_0 = arith.constant 0 : i32
    return %arg0, %c0_i32 : i32, i32
  }
  func.func @transform_2(%arg0: i32) -> (i32, i32) {
    %c0_i32 = arith.constant 0 : i32
    %c0_i32_0 = arith.constant 0 : i32
    return %arg0, %c0_i32 : i32, i32
  }
}

</mosaic_0001>

<llo_original>
// kernel: tpu_custom_call.1
$region0: #{tpu_custom_call.1}
  #allocation0 [shape = 'u32[]', space=smem, size = 0x4, offset = 0x4, fixed_abs, tag = 'smem constant byte address 0x4 - core index']
  #allocation1 [shape = 'u32[144,128]{1,0:T(1,128)}', space=vmem, size = 0x12000, scoped, tag = 'internal scratch']
  %s0 = inlined_call_operand.vmem [shape: f32[8,32], index: 0, kind: input, shape index: {}]
  %s1 = inlined_call_operand.vmem [shape: s32[8,1], index: 1, kind: input, shape index: {}]
  %s2 = inlined_call_operand.hbm [shape: f32[1,1], index: 2, kind: output, shape index: {}]
  %s3 = sld [smem:[#allocation0]]
  $region18: #{tpu_custom_call.1} parent=0
    _
  %s5 = ssub.s32 1, %s3
  %s6 = scalar_select 0, %s5, %s3
  $region1: #{tpu_custom_call.1} parent=0
    #allocation2 [shape = 'u8[512]{0}', space=smem, size = 0x200, scoped, tag = 'output window, operand 0, single buffered']
    #allocation3 [shape = 's32[1]{0}', space=sflag, size = 0x4, scoped, tag = 'scoped memory for tpu_custom_call.1']
    %7 = vsyncpa [#allocation3], 0
    // Predicated region
    $region2: #{tpu_custom_call.1} parent=1 // pred_check
      _
    $region3: #{tpu_custom_call.1} parent=1 // pred_check_branch
      %9 = sbr.rel (0) target = $region5
    $region4: #{tpu_custom_call.1} parent=1 // pred_region
      _
    $region5: #{tpu_custom_call.1} parent=1 // pred_fallthru
      _
    // Predicated region
    $region6: #{tpu_custom_call.1} parent=1 // pred_check
      _
    $region7: #{tpu_custom_call.1} parent=1 // pred_check_branch
      %11 = sbr.rel (0) target = $region9
    $region8: #{tpu_custom_call.1} parent=1 // pred_region
      _
    $region9: #{tpu_custom_call.1} parent=1 // pred_fallthru
      _
    %v12 = vld [vmem:[%s0] sm:$0xff]
    %v13 = vld [vmem:[%s1] sm:$0xff]
    %v14 = vlaneseq
    %v15 = vand.u32 %v14, 127
    %16 = vset.pattern.permute.xlu0 0
    %17 = vperm.xlu0 %16, %v13
    %v18 = vpop.permute.xlu0 %17
    %vm19 = vcmp.eq.s32.totalorder %v15, %v18
    %v20 = vsel %vm19, %v12, 0.0
    %vm21 = vcmask 261120
    %v22 = vsel %vm21, %v20, 0.0
    %23 = vadd.xlane.f32.xlu0 %v22
    %v24 = vpop.xlane.xlu0 %23
    %s25 = smul.u32 0, 8
    %v26 = vlaneseq
    %v27 = vshrl.u32 %v26, 7
    %v28 = vstv %s25
    %v29 = vadd.s32 %v28, %v27
    %vm30 = vcmp.lt.s32.totalorder %v29, 8
    %v31 = vsel %vm30, %v24, 1.0
    %v32 = vlog2.pop %v31
    %v33 = vmul.f32 %v32, 0.6931472
    %v34 = vsub.f32 0.0, %v33
    %vm35 = vcmask 7168
    %v36 = vsel %vm35, %v34, 0.0
    %37 = vadd.xlane.f32.xlu0 %v36
    %v38 = vpop.xlane.xlu0 %37
    %v39 = vrot.slane %v38, 4
    %v40 = vadd.f32 %v38, %v39
    %v41 = vrot.slane %v40, 2
    %v42 = vadd.f32 %v40, %v41
    %v43 = vrot.slane %v42, 1
    %v44 = vadd.f32 %v42, %v43
    %s45 = vtos %v44
    %s46 = scalar_lea.smem [#allocation2], 0
    %47 = sst [smem:[%s46]] %s45
    // Predicated region
    $region10: #{tpu_custom_call.1} parent=1 // pred_check
      _
    $region11: #{tpu_custom_call.1} parent=1 // pred_check_branch
      %49 = sbr.rel (0) target = $region13
    $region12: #{tpu_custom_call.1} parent=1 // pred_region
      %s51 = ssub.s32 16, 16
      %52 = vsyncadd [#allocation3], %s51
      %55 = dma.smem_to_hbm [#allocation2], 16, %s2, [#allocation3]
    $region13: #{tpu_custom_call.1} parent=1 // pred_fallthru
      _
    // Predicated region
    $region14: #{tpu_custom_call.1} parent=1 // pred_check
      _
    $region15: #{tpu_custom_call.1} parent=1 // pred_check_branch
      %57 = sbr.rel (0) target = $region17
    $region16: #{tpu_custom_call.1} parent=1 // pred_region
      %58 = dma.done [#allocation3], 16
    $region17: #{tpu_custom_call.1} parent=1 // pred_fallthru
      _
    %59 = sfence
    %60 = vsyncpa [#allocation3], 1

</llo_original>
